<compile_context>
chip_gen: v7x
topology: tpu7x:2x2x1
jax: 0.10.0
libtpu: 0.0.40
codegen_flags: <defaults>
</compile_context>

<pallas_src>
import math
from functools import partial  # noqa: F401  (kept for parity with other kernels)

import jax
import jax.numpy as jnp
import numpy as np
from jax.experimental import pallas as pl
from jax.experimental.pallas import tpu as pltpu

_LANE = 128
_INV_SCALE = 1.0 / 1.1          # replaces .div_(1.1); <=1 ulp vs true divide


def _round_up(a, b):
    return ((a + b - 1) // b) * b


def _tpu_params():
    """Per-generation (block byte target, vmem_limit_bytes, megacore hint)."""
    target_bytes = 4 << 20       # v5e/v6e: ~4 MiB blocks (~85-86% of HBM roofline)
    vmem_limit = 48 << 20        # 4x4 MiB pipeline buffers, physical VMEM is 128 MiB
    two_cores = False
    try:
        info = pltpu.get_tpu_info()
        vmem_cap = int(getattr(info, "vmem_capacity_bytes", 128 << 20))
        if vmem_cap <= (64 << 20):   # v7x-class: 64 MiB VMEM/TC, 2 TCs, 3.2 TB/s HBM
            target_bytes = 8 << 20
            vmem_limit = 44 << 20    # 4x8 MiB double buffers + headroom, < 64 MiB
            two_cores = True
    except Exception:
        pass                         # keep safe defaults if the query fails
    return target_bytes, vmem_limit, two_cores


def _choose_tiles(R, L, itemsize, target_bytes, prefer_two_row_blocks):
    """Pick (tr, tc) jointly so tr*tc*itemsize ~= target_bytes.

    tc is a multiple of 128 (or full lane-padded width), tr a multiple of the
    sublane packing.  Neither needs to divide the array: the grid uses cdiv
    and Pallas masks partial edge blocks.
    """
    sub = 16 if itemsize == 2 else 8
    Lc = _round_up(L, _LANE)
    Rc = _round_up(R, sub)

    if Lc * sub * itemsize <= target_bytes:
        tc = Lc                                      # full-width rows: contiguous DMA
    else:
        tc = max(_LANE, ((target_bytes // (sub * itemsize)) // _LANE) * _LANE)
        tc = min(tc, Lc)

    rows = max(sub, target_bytes // (tc * itemsize))
    tr = max(sub, (rows // sub) * sub)
    tr = min(tr, Rc)

    # v7x megacore: keep >=2 row blocks so both TensorCores get work.
    if prefer_two_row_blocks and R > sub and (-(-R // tr)) < 2:
        tr = min(tr, _round_up(-(-Rc // 2), sub))

    return tr, tc


def _group_swish_kernel(sp_ref, x_ref, o_ref):
    """One (tr, tc) elementwise tile of GroupSwish.

    sp_ref : VMEM (tr, 1) f32 — per-row softplus(beta), precomputed in wrapper.
    x_ref  : VMEM (tr, tc)    — the group of row r is baked into sp_ref[r].
    """
    x = x_ref[...].astype(jnp.float32)               # upcast once (bf16-safe)
    sp = sp_ref[...]                                 # (tr, 1), broadcasts over lanes
    z = x * sp
    sig = 0.5 * (jnp.tanh(0.5 * z) + 1.0)            # sigmoid via a single EUP tanh
    o_ref[...] = (x * sig * jnp.float32(_INV_SCALE)).astype(o_ref.dtype)


def group_swish(x, beta, groups):
    """x: (N, C, *spatial), beta: (groups,).  Returns same shape/dtype as x."""
    N, C = x.shape[0], x.shape[1]
    assert C % groups == 0, "channels must be divisible by groups"
    spatial = x.shape[2:]
    ls = int(math.prod(spatial)) if spatial else 1
    n_ch_group = C // groups

    R = N * groups                 # one row per (batch, group)
    L = n_ch_group * ls            # lane-dense: all of the group's elements
    x2 = x.reshape(R, L)           # free row-major reshape

    itemsize = jnp.dtype(x.dtype).itemsize
    target_bytes, vmem_limit, two_cores = _tpu_params()
    tr, tc = _choose_tiles(R, L, itemsize, target_bytes, two_cores)

    # Per-row softplus(beta): tiny (R, 1) f32 column, computed once, stable.
    sp_col = jax.nn.softplus(beta.astype(jnp.float32))[
        jnp.arange(R) % groups].reshape(R, 1)

    grid = (pl.cdiv(R, tr), pl.cdiv(L, tc))

    out2 = pl.pallas_call(
        _group_swish_kernel,
        out_shape=jax.ShapeDtypeStruct((R, L), x.dtype),
        grid_spec=pltpu.PrefetchScalarGridSpec(
            num_scalar_prefetch=0,
            grid=grid,
            in_specs=[
                pl.BlockSpec((tr, 1), lambda i, j: (i, 0)),    # softplus(beta) column
                pl.BlockSpec((tr, tc), lambda i, j: (i, j)),   # activations
            ],
            out_specs=pl.BlockSpec((tr, tc), lambda i, j: (i, j)),
        ),
        compiler_params=pltpu.CompilerParams(
            dimension_semantics=("parallel", "parallel"),
            vmem_limit_bytes=vmem_limit,
        ),
    )(sp_col, x2)

    return out2.reshape(x.shape)


def group_swish_ref(x, beta, groups):
    """Pure-JAX reference mirroring the PyTorch forward exactly."""
    t = x.shape[2:]
    n_ch_group = x.shape[1] // groups
    xr = x.reshape(-1, groups, n_ch_group, *t)
    b = beta.reshape(1, groups, 1, *[1 for _ in t])
    sp = jax.nn.softplus(b)
    out = (xr * jax.nn.sigmoid(xr * sp)) / 1.1
    return out.reshape(-1, groups * n_ch_group, *t)


if __name__ == "__main__":
    key = jax.random.PRNGKey(0)

    # Primary case (matches the module's intended use): N=2, C=4, 16x16 spatial.
    N, C, H, W = 2, 4, 16, 16
    groups = 2
    x = jax.random.normal(key, (N, C, H, W), dtype=jnp.float32)
    beta = jnp.full((groups,), 0.5, dtype=jnp.float32)   # nn.Parameter init 0.5

    out = jax.block_until_ready(group_swish(x, beta, groups))
    ref = group_swish_ref(x, beta, groups)
    np.testing.assert_allclose(np.asarray(out), np.asarray(ref),
                               rtol=1e-5, atol=1e-5)
    assert out.shape == (N, C, H, W)
    assert out.dtype == x.dtype

    # Ragged case: exercises masked partial edge blocks (no padding round-trip).
    key2 = jax.random.PRNGKey(1)
    x2 = jax.random.normal(key2, (3, 6, 7, 5), dtype=jnp.float32)
    beta2 = jnp.array([0.5, -0.3, 1.2], dtype=jnp.float32)
    out2 = jax.block_until_ready(group_swish(x2, beta2, 3))
    ref2 = group_swish_ref(x2, beta2, 3)
    np.testing.assert_allclose(np.asarray(out2), np.asarray(ref2),
                               rtol=1e-5, atol=1e-5)

    print("KERNEL_OK")
</pallas_src>

<mosaic_0001>
module attributes {stable_mosaic.version = 11 : i64} {
  func.func @_group_swish_kernel(%arg0: i32, %arg1: i32, %arg2: memref<8x1xf32, #tpu.memory_space<vmem>>, %arg3: memref<8x512xf32, #tpu.memory_space<vmem>>, %arg4: memref<8x512xf32, #tpu.memory_space<vmem>>) attributes {dimension_semantics = [#tpu.dimension_semantics<parallel>, #tpu.dimension_semantics<parallel>], iteration_bounds = array<i64: 1, 1>, scalar_prefetch = 0 : i64, scratch_operands = 0 : i64, tpu.core_type = #tpu.core_type<tc>, window_params = [{transform_indices = @transform_0, window_bounds = array<i64: 8, 1>}, {transform_indices = @transform_1, window_bounds = array<i64: 8, 512>}, {transform_indices = @transform_2, window_bounds = array<i64: 8, 512>}]} {
    %c0 = arith.constant 0 : index
    %c0_0 = arith.constant 0 : index
    %0 = vector.load %arg3[%c0, %c0_0] : memref<8x512xf32, #tpu.memory_space<vmem>>, vector<8x512xf32>
    %c0_1 = arith.constant 0 : index
    %c0_2 = arith.constant 0 : index
    %1 = vector.load %arg2[%c0_1, %c0_2] : memref<8x1xf32, #tpu.memory_space<vmem>>, vector<8x1xf32>
    %2 = vector.broadcast %1 : vector<8x1xf32> to vector<8x512xf32>
    %3 = arith.mulf %0, %2 : vector<8x512xf32>
    %cst = arith.constant 5.000000e-01 : f32
    %4 = vector.broadcast %cst : f32 to vector<8x512xf32>
    %5 = arith.mulf %4, %3 : vector<8x512xf32>
    %6 = math.tanh %5 : vector<8x512xf32>
    %cst_3 = arith.constant 1.000000e+00 : f32
    %7 = vector.broadcast %cst_3 : f32 to vector<8x512xf32>
    %8 = arith.addf %6, %7 : vector<8x512xf32>
    %cst_4 = arith.constant 5.000000e-01 : f32
    %9 = vector.broadcast %cst_4 : f32 to vector<8x512xf32>
    %10 = arith.mulf %9, %8 : vector<8x512xf32>
    %11 = arith.mulf %0, %10 : vector<8x512xf32>
    %cst_5 = arith.constant 0.909090936 : f32
    %12 = vector.broadcast %cst_5 : f32 to vector<8x512xf32>
    %13 = arith.mulf %11, %12 : vector<8x512xf32>
    %c0_6 = arith.constant 0 : index
    %c0_7 = arith.constant 0 : index
    %14 = vector.load %arg4[%c0_6, %c0_7] : memref<8x512xf32, #tpu.memory_space<vmem>>, vector<8x512xf32>
    tpu.vector_store %arg4[%c0_6, %c0_7], %13 {strides = array<i32>} : memref<8x512xf32, #tpu.memory_space<vmem>>, vector<8x512xf32>,
    return
  }
  func.func @transform_0(%arg0: i32, %arg1: i32) -> (i32, i32) {
    %c0_i32 = arith.constant 0 : i32
    %c0_i32_0 = arith.constant 0 : i32
    return %arg0, %c0_i32 : i32, i32
  }
  func.func @transform_1(%arg0: i32, %arg1: i32) -> (i32, i32) {
    %c0_i32 = arith.constant 0 : i32
    return %arg0, %arg1 : i32, i32
  }
  func.func @transform_2(%arg0: i32, %arg1: i32) -> (i32, i32) {
    %c0_i32 = arith.constant 0 : i32
    return %arg0, %arg1 : i32, i32
  }
}

</mosaic_0001>

<llo_original>
// kernel: tpu_custom_call.1
$region0: #{tpu_custom_call.1}
  #allocation0 [shape = 'u32[]', space=smem, size = 0x4, offset = 0x4, fixed_abs, tag = 'smem constant byte address 0x4 - core index']
  #allocation1 [shape = 'u32[144,128]{1,0:T(1,128)}', space=vmem, size = 0x12000, scoped, tag = 'internal scratch']
  %s0 = inlined_call_operand.vmem [shape: f32[4,1], index: 0, kind: input, shape index: {}]
  %s1 = inlined_call_operand.hbm [shape: f32[4,512], index: 1, kind: input, shape index: {}]
  %s2 = inlined_call_operand.hbm [shape: f32[4,512], index: 2, kind: output, shape index: {}]
  %s3 = sld [smem:[#allocation0]]
  $region22: #{tpu_custom_call.1} parent=0
    _
  %s5 = ssub.s32 1, %s3
  %s6 = scalar_select 0, %s5, %s3
  $region1: #{tpu_custom_call.1} parent=0
    #allocation2 [shape = 'u8[16384]{0}', space=vmem, size = 0x4000, scoped, tag = 'input window, operand 1, single buffered']
    #allocation3 [shape = 's32[1]{0}', space=sflag, size = 0x4, scoped, tag = 'scoped memory for tpu_custom_call.1']
    #allocation4 [shape = 's32[1]{0}', space=sflag, size = 0x4, scoped, tag = 'scoped memory for tpu_custom_call.1']
    #allocation5 [shape = 'u8[16384]{0}', space=vmem, size = 0x4000, scoped, tag = 'output window, operand 0, single buffered']
    %7 = vsyncpa [#allocation3], 0
    %8 = vsyncpa [#allocation4], 0
    // Predicated region
    $region2: #{tpu_custom_call.1} parent=1 // pred_check
      _
    $region3: #{tpu_custom_call.1} parent=1 // pred_check_branch
      %10 = sbr.rel (0) target = $region5
    $region4: #{tpu_custom_call.1} parent=1 // pred_region
      _
    $region5: #{tpu_custom_call.1} parent=1 // pred_fallthru
      _
    // Predicated region
    $region6: #{tpu_custom_call.1} parent=1 // pred_check
      _
    $region7: #{tpu_custom_call.1} parent=1 // pred_check_branch
      %12 = sbr.rel (0) target = $region9
    $region8: #{tpu_custom_call.1} parent=1 // pred_region
      %s14 = ssub.s32 512, 256
      %15 = vsyncadd [#allocation3], %s14
      %s16 = sshll.u32 [#allocation2], 4
      %s17 = int_to_ptr.vmem [resolvable:$true] %s16
      %22 = dma.hbm_to_vmem [thread:$0]  %s1, 256, %s17, [#allocation3], 256, 256, 16
    $region9: #{tpu_custom_call.1} parent=1 // pred_fallthru
      _
    // Predicated region
    $region10: #{tpu_custom_call.1} parent=1 // pred_check
      _
    $region11: #{tpu_custom_call.1} parent=1 // pred_check_branch
      %24 = sbr.rel (0) target = $region13
    $region12: #{tpu_custom_call.1} parent=1 // pred_region
      %25 = dma.done [#allocation3], 512
    $region13: #{tpu_custom_call.1} parent=1 // pred_fallthru
      _
    %v26 = vld [vmem:[#allocation2] sm:$0xff]
    %v27 = vld [vmem:[#allocation2 + $0x8] sm:$0xff]
    %v28 = vld [vmem:[#allocation2 + $0x10] sm:$0xff]
    %v29 = vld [vmem:[#allocation2 + $0x18] sm:$0xff]
    %v30 = vld [vmem:[%s0] sm:$0xff]
    %32 = vset.pattern.permute.xlu0 0
    %33 = vperm.xlu0 %32, %v30
    %v34 = vpop.permute.xlu0 %33
    %v36 = vunpack.c.l.s4 839922192
    %v37 = vunpack.c.0.s8 %v36
    %v38 = vlaneseq
    %v39 = vshrl.u32 %v38, 7
    %v40 = vsub.s32 %v37, %v39
    %v41 = vrot.slane %v34, %v40
    %v43 = vunpack.c.l.s4 1985246804
    %v44 = vunpack.c.0.s8 %v43
    %v45 = vlaneseq
    %v46 = vshrl.u32 %v45, 7
    %v47 = vsub.s32 %v44, %v46
    %v48 = vrot.slane %v34, %v47
    %v51 = vmul.f32 %v26, %v41
    %v52 = vmul.f32 %v27, %v41
    %v53 = vmul.f32 %v28, %v48
    %v54 = vmul.f32 %v29, %v48
    %v55 = vmul.f32 %v51, 0.5
    %v56 = vmul.f32 %v52, 0.5
    %v57 = vmul.f32 %v53, 0.5
    %v58 = vmul.f32 %v54, 0.5
    %v59 = vtanh.pop %v55
    %v60 = vtanh.pop %v56
    %v61 = vtanh.pop %v57
    %v62 = vtanh.pop %v58
    %v63 = vadd.f32 %v59, 1.0
    %v64 = vadd.f32 %v60, 1.0
    %v65 = vadd.f32 %v61, 1.0
    %v66 = vadd.f32 %v62, 1.0
    %v67 = vmul.f32 %v63, 0.5
    %v68 = vmul.f32 %v64, 0.5
    %v69 = vmul.f32 %v65, 0.5
    %v70 = vmul.f32 %v66, 0.5
    %v71 = vmul.f32 %v26, %v67
    %v72 = vmul.f32 %v27, %v68
    %v73 = vmul.f32 %v28, %v69
    %v74 = vmul.f32 %v29, %v70
    %v75 = vmul.f32 %v71, 0.90909094
    %v76 = vmul.f32 %v72, 0.90909094
    %v77 = vmul.f32 %v73, 0.90909094
    %v78 = vmul.f32 %v74, 0.90909094
    %79 = vst [vmem:[#allocation5] sm:$0xff] %v75
    %80 = vst [vmem:[#allocation5 + $0x8] sm:$0xff] %v76
    %81 = vst [vmem:[#allocation5 + $0x10] sm:$0xff] %v77
    %82 = vst [vmem:[#allocation5 + $0x18] sm:$0xff] %v78
    // Predicated region
    $region14: #{tpu_custom_call.1} parent=1 // pred_check
      _
    $region15: #{tpu_custom_call.1} parent=1 // pred_check_branch
      %84 = sbr.rel (0) target = $region17
    $region16: #{tpu_custom_call.1} parent=1 // pred_region
      %s86 = ssub.s32 512, 256
      %87 = vsyncadd [#allocation4], %s86
      %s88 = sshll.u32 [#allocation5], 4
      %s89 = int_to_ptr.vmem [resolvable:$true] %s88
      %94 = dma.vmem_to_hbm [thread:$0]  %s89, 256, %s2, [#allocation4], 256, 256, 16
    $region17: #{tpu_custom_call.1} parent=1 // pred_fallthru
      _
    // Predicated region
    $region18: #{tpu_custom_call.1} parent=1 // pred_check
      _
    $region19: #{tpu_custom_call.1} parent=1 // pred_check_branch
      %96 = sbr.rel (0) target = $region21
    $region20: #{tpu_custom_call.1} parent=1 // pred_region
      %97 = dma.done [#allocation4], 512
    $region21: #{tpu_custom_call.1} parent=1 // pred_fallthru
      _
    %98 = vsyncpa [#allocation3], 1
    %99 = vsyncpa [#allocation4], 1

</llo_original>
